<compile_context>
chip_gen: v5e
topology: v5e:2x2
jax: 0.10.0
libtpu: 0.0.40
codegen_flags: <defaults>
</compile_context>

<pallas_src>
import math

import jax
import jax.numpy as jnp
from jax.experimental import pallas as pl
from jax.experimental.pallas import tpu as pltpu


_LANE = 128


def _layer_scale_kernel(x_ref, gamma_ref, o_ref):
    # x_ref: (tile_rows, width) tile in VMEM; gamma_ref: (1, width), broadcast over rows.
    g = gamma_ref[...]
    o_ref[...] = (x_ref[...].astype(g.dtype) * g).astype(o_ref.dtype)


def _device_kind() -> str:
    try:
        return jax.devices()[0].device_kind.lower()
    except Exception:
        return ""


def _tpu_vmem_capacity_bytes() -> int:
    try:
        return int(pltpu.get_tpu_info().vmem_capacity_bytes)
    except Exception:
        pass
    if "v7" in _device_kind():
        return 64 << 20
    return 128 << 20


def _vmem_budget_and_target_block():
    """Returns (vmem_limit ceiling, per-block target bytes), generation-aware."""
    cap = _tpu_vmem_capacity_bytes()
    if cap <= (64 << 20):              # v7x-class: 64 MiB per TensorCore -> leave headroom
        return 48 << 20, 10 << 20
    return 100 << 20, 16 << 20         # v5e/v6e: 128 MiB physical VMEM -> bigger blocks


def _has_low_precision_vpu() -> bool:
    # v5-class and older have no bf16 VALU -> keep f32 math there; v6e/v7x multiply natively.
    kind = _device_kind()
    return not any(tag in kind for tag in ("v2", "v3", "v4", "v5"))


def _sublane_pack(dtype) -> int:
    # Native sublane packing: 8 for 32-bit, 16 for 16-bit, 32 for 8-bit dtypes.
    return max(8, 32 // jnp.dtype(dtype).itemsize)


def _pick_lane_width(dim: int, total: int):
    """Choose the 2-D lane width and whether rows get folded into the lane axis."""
    if dim % _LANE == 0:
        return dim, False                              # already lane-dense
    base = math.lcm(dim, _LANE)
    if total % base == 0:
        width = base
        for mult in (8, 4, 2):                         # widen while keeping >= 8 rows
            cand = base * mult
            if cand <= 4096 and total % cand == 0 and total // cand >= 8:
                width = cand
                break
        return width, True
    return dim, False                                  # correct fallback: masked partial stores


def _pick_tile_rows(n_rows: int, width: int, itemsize: int, pack: int,
                    target_bytes: int, min_blocks: int = 2) -> int:
    if n_rows <= pack:
        return n_rows                                  # one full-extent block (legal block shape)
    target_rows = max(pack, target_bytes // max(1, width * itemsize))
    if min_blocks > 1 and n_rows >= min_blocks * pack:
        # Guarantee >= min_blocks grid steps so v7x's two TensorCores both stream.
        target_rows = min(target_rows, n_rows // min_blocks)
    target_rows = min(target_rows, n_rows)
    target_rows = max(pack, (target_rows // pack) * pack)
    if n_rows % pack == 0:
        rows = target_rows
        while rows >= pack:                            # prefer exact divisor: no ragged tail block
            if n_rows % rows == 0:
                return rows
            rows -= pack
    return target_rows


def layer_scale(x: jax.Array, gamma: jax.Array, *, donate_x: bool = False) -> jax.Array:
    """LayerScale forward: x * gamma, gamma shaped (dim,), broadcast over leading dims."""
    orig_shape = x.shape
    dim = orig_shape[-1]
    if gamma.shape != (dim,):
        raise ValueError(f"gamma must have shape ({dim},), got {gamma.shape}")
    if not jnp.issubdtype(x.dtype, jnp.floating):
        # TODO(synk): PyTorch would promote integer x to float; we require float inputs instead.
        raise TypeError(f"layer_scale expects floating-point x, got {x.dtype}")

    total = math.prod(orig_shape)
    if total == 0:
        return x

    # Compute dtype: native on v6e/v7x (bf16 VALU), f32 upcast only on v5-class and older.
    if jnp.dtype(x.dtype).itemsize >= 4 or _has_low_precision_vpu():
        compute_dtype = x.dtype
    else:
        compute_dtype = jnp.float32
    gamma_c = gamma.astype(compute_dtype)

    width, folded = _pick_lane_width(dim, total)
    if folded:
        x2d = x.reshape(total // width, width)
        gamma_row = jnp.tile(gamma_c, width // dim).reshape(1, width)
    else:
        x2d = x.reshape(total // dim, dim)
        gamma_row = gamma_c.reshape(1, dim)

    n_rows = x2d.shape[0]
    itemsize = jnp.dtype(x.dtype).itemsize
    pack = _sublane_pack(x.dtype)
    vmem_budget, target_block = _vmem_budget_and_target_block()
    tile_rows = _pick_tile_rows(n_rows, width, itemsize, pack, target_block, min_blocks=2)
    num_blocks = pl.cdiv(n_rows, tile_rows)

    # 2x double-buffered input + 2x output blocks + resident gamma + headroom, clamped to the
    # generation-specific budget (never claims the full 64 MiB on v7x).
    block_bytes = tile_rows * width * itemsize
    gamma_bytes = width * jnp.dtype(compute_dtype).itemsize
    vmem_need = 4 * block_bytes + gamma_bytes + (4 << 20)
    vmem_limit = int(min(max(vmem_need, 16 << 20), vmem_budget))

    out2d = pl.pallas_call(
        _layer_scale_kernel,
        out_shape=jax.ShapeDtypeStruct(x2d.shape, x.dtype),
        grid_spec=pl.GridSpec(
            grid=(num_blocks,),
            in_specs=[
                pl.BlockSpec((tile_rows, width), lambda i: (i, 0)),
                pl.BlockSpec((1, width), lambda i: (0, 0)),   # gamma stays resident in VMEM
            ],
            out_specs=pl.BlockSpec((tile_rows, width), lambda i: (i, 0)),
        ),
        compiler_params=pltpu.CompilerParams(
            dimension_semantics=("parallel",),
            vmem_limit_bytes=vmem_limit,
        ),
        cost_estimate=pl.CostEstimate(
            flops=total,
            transcendentals=0,
            bytes_accessed=2 * total * itemsize + dim * jnp.dtype(compute_dtype).itemsize,
        ),
        # PyTorch `inplace=True` analogue: callers that donate x can reuse its HBM buffer.
        input_output_aliases=({0: 0} if donate_x else {}),
    )(x2d, gamma_row)

    # TODO(synk): when LayerScale follows a producer op in the same graph, fusing it into the
    # producer (or enabling input fusion) removes this standalone HBM round trip entirely.
    return out2d.reshape(orig_shape)


if __name__ == "__main__":
    key = jax.random.PRNGKey(0)
    k0, k1, k2 = jax.random.split(key, 3)
    init_values = 1e-5

    # 1) Mirrors LayerScale(dim=32, init_values=1e-5): small dim -> lane-folding (width=128).
    x = jax.random.normal(k0, (2, 8, 32), dtype=jnp.float32)
    gamma = init_values * jnp.ones((32,), dtype=jnp.float32)
    out = jax.block_until_ready(layer_scale(x, gamma))
    assert out.shape == x.shape and out.dtype == x.dtype
    assert jnp.allclose(out, x * gamma, rtol=1e-6, atol=1e-6), "mismatch vs reference (dim=32)"

    # 2) dim already a multiple of 128 -> lane-dense path, multi-block grid (>=2 blocks).
    x2 = jax.random.normal(k1, (4, 64, 256), dtype=jnp.float32)
    gamma2 = init_values * jnp.ones((256,), dtype=jnp.float32)
    out2 = jax.block_until_ready(layer_scale(x2, gamma2))
    assert jnp.allclose(out2, x2 * gamma2, rtol=1e-6, atol=1e-6), "mismatch vs reference (dim=256)"

    # 3) bf16 with dim=96 -> lcm-based lane folding + native/low-precision compute path.
    x3 = jax.random.normal(k2, (4, 32, 96), dtype=jnp.bfloat16)
    gamma3 = init_values * jnp.ones((96,), dtype=jnp.float32)
    out3 = jax.block_until_ready(layer_scale(x3, gamma3))
    ref3 = (x3.astype(jnp.float32) * gamma3).astype(jnp.bfloat16)
    assert out3.dtype == x3.dtype
    assert jnp.allclose(out3.astype(jnp.float32), ref3.astype(jnp.float32),
                        rtol=2e-2, atol=1e-8), "mismatch vs reference (dim=96, bf16)"

    print("KERNEL_OK")
</pallas_src>

<mosaic_0001>
module attributes {stable_mosaic.version = 11 : i64} {
  func.func @_layer_scale_kernel(%arg0: i32, %arg1: memref<4x128xf32, #tpu.memory_space<vmem>>, %arg2: memref<1x128xf32, #tpu.memory_space<vmem>>, %arg3: memref<4x128xf32, #tpu.memory_space<vmem>>) attributes {dimension_semantics = [#tpu.dimension_semantics<parallel>], iteration_bounds = array<i64: 1>, scalar_prefetch = 0 : i64, scratch_operands = 0 : i64, tpu.core_type = #tpu.core_type<tc>, window_params = [{transform_indices = @transform_0, window_bounds = array<i64: 4, 128>}, {pipeline_mode = #tpu.pipeline_mode<synchronous>, transform_indices = @transform_1, window_bounds = array<i64: 1, 128>}, {transform_indices = @transform_2, window_bounds = array<i64: 4, 128>}]} {
    %c0 = arith.constant 0 : index
    %c0_0 = arith.constant 0 : index
    %0 = vector.load %arg2[%c0, %c0_0] : memref<1x128xf32, #tpu.memory_space<vmem>>, vector<1x128xf32>
    %c0_1 = arith.constant 0 : index
    %c0_2 = arith.constant 0 : index
    %1 = vector.load %arg1[%c0_1, %c0_2] : memref<4x128xf32, #tpu.memory_space<vmem>>, vector<4x128xf32>
    %2 = vector.broadcast %0 : vector<1x128xf32> to vector<4x128xf32>
    %3 = arith.mulf %1, %2 : vector<4x128xf32>
    %c0_3 = arith.constant 0 : index
    %c0_4 = arith.constant 0 : index
    %4 = vector.load %arg3[%c0_3, %c0_4] : memref<4x128xf32, #tpu.memory_space<vmem>>, vector<4x128xf32>
    tpu.vector_store %arg3[%c0_3, %c0_4], %3 {strides = array<i32>} : memref<4x128xf32, #tpu.memory_space<vmem>>, vector<4x128xf32>,
    return
  }
  func.func @transform_0(%arg0: i32) -> (i32, i32) {
    %c0_i32 = arith.constant 0 : i32
    %c0_i32_0 = arith.constant 0 : i32
    return %arg0, %c0_i32 : i32, i32
  }
  func.func @transform_1(%arg0: i32) -> (i32, i32) {
    %c0_i32 = arith.constant 0 : i32
    %c0_i32_0 = arith.constant 0 : i32
    %c0_i32_1 = arith.constant 0 : i32
    return %c0_i32, %c0_i32_0 : i32, i32
  }
  func.func @transform_2(%arg0: i32) -> (i32, i32) {
    %c0_i32 = arith.constant 0 : i32
    %c0_i32_0 = arith.constant 0 : i32
    return %arg0, %c0_i32 : i32, i32
  }
}

</mosaic_0001>

<llo_original>
// kernel: tpu_custom_call.1
$region0: #{tpu_custom_call.1}
  #allocation0 [shape = 'u32[]', space=smem, size = 0x4, offset = 0x4, fixed_abs, tag = 'smem constant byte address 0x4 - core index']
  #allocation1 [shape = 'u32[72,128]{1,0:T(1,128)}', space=vmem, size = 0x9000, scoped, tag = 'internal scratch']
  %s0 = inlined_call_operand.hbm [shape: f32[4,128], index: 0, kind: input, shape index: {}]
  %s1 = inlined_call_operand.hbm [shape: f32[1,128], index: 1, kind: input, shape index: {}]
  %s2 = inlined_call_operand.hbm [shape: f32[4,128], index: 2, kind: output, shape index: {}]
  %s3 = sld [smem:[#allocation0]]
  $region26: #{tpu_custom_call.1} parent=0
    _
  %s5 = ssub.s32 1, %s3
  %s6 = scalar_select 0, %s5, %s3
  $region1: #{tpu_custom_call.1} parent=0
    #allocation2 [shape = 'u8[2048]{0}', space=vmem, size = 0x800, scoped, tag = 'input window, operand 0, single buffered']
    #allocation3 [shape = 's32[1]{0}', space=sflag, size = 0x4, scoped, tag = 'scoped memory for tpu_custom_call.1']
    #allocation4 [shape = 's32[1]{0}', space=sflag, size = 0x4, scoped, tag = 'scoped memory for tpu_custom_call.1']
    #allocation5 [shape = 'u8[512]{0}', space=vmem, size = 0x400, scoped, tag = 'input window, operand 1, single buffered']
    #allocation6 [shape = 's32[1]{0}', space=sflag, size = 0x4, scoped, tag = 'scoped memory for tpu_custom_call.1']
    #allocation7 [shape = 'u8[2048]{0}', space=vmem, size = 0x800, scoped, tag = 'output window, operand 0, single buffered']
    %7 = vsyncpa [#allocation3], 0
    %8 = vsyncpa [#allocation6], 0
    %9 = vsyncpa [#allocation4], 0
    // Predicated region
    $region2: #{tpu_custom_call.1} parent=1 // pred_check
      _
    $region3: #{tpu_custom_call.1} parent=1 // pred_check_branch
      %11 = sbr.rel (0) target = $region5
    $region4: #{tpu_custom_call.1} parent=1 // pred_region
      %13 = vsyncadd [#allocation3], 0
      %s15 = sshll.u32 %s0, 4
      %s16 = int_to_ptr.hbm [resolvable:$true] %s15
      %s17 = sshll.u32 [#allocation2], 4
      %s18 = int_to_ptr.vmem [resolvable:$true] %s17
      %20 = dma.hbm_to_vmem [thread:$0]  %s16, 64, %s18, [#allocation3]
    $region5: #{tpu_custom_call.1} parent=1 // pred_fallthru
      _
    // Predicated region
    $region6: #{tpu_custom_call.1} parent=1 // pred_check
      _
    $region7: #{tpu_custom_call.1} parent=1 // pred_check_branch
      %22 = sbr.rel (0) target = $region9
    $region8: #{tpu_custom_call.1} parent=1 // pred_region
      %24 = vsyncadd [#allocation6], 0
      %s26 = sshll.u32 %s1, 4
      %s27 = int_to_ptr.hbm [resolvable:$true] %s26
      %s28 = sshll.u32 [#allocation5], 4
      %s29 = int_to_ptr.vmem [resolvable:$true] %s28
      %31 = dma.hbm_to_vmem [thread:$0]  %s27, 16, %s29, [#allocation6]
    $region9: #{tpu_custom_call.1} parent=1 // pred_fallthru
      _
    // Predicated region
    $region10: #{tpu_custom_call.1} parent=1 // pred_check
      _
    $region11: #{tpu_custom_call.1} parent=1 // pred_check_branch
      %33 = sbr.rel (0) target = $region13
    $region12: #{tpu_custom_call.1} parent=1 // pred_region
      %35 = dma.done [#allocation3], 64
    $region13: #{tpu_custom_call.1} parent=1 // pred_fallthru
      _
    // Predicated region
    $region14: #{tpu_custom_call.1} parent=1 // pred_check
      _
    $region15: #{tpu_custom_call.1} parent=1 // pred_check_branch
      %37 = sbr.rel (0) target = $region17
    $region16: #{tpu_custom_call.1} parent=1 // pred_region
      %39 = dma.done [#allocation6], 16
    $region17: #{tpu_custom_call.1} parent=1 // pred_fallthru
      _
    %v40 = vld [vmem:[#allocation5] sm:$0x1]
    %v41 = vld [vmem:[#allocation2] sm:$0xf]
    %v43 = vperm.slane %v40, 0
    %v45 = vmul.f32 %v41, %v43
    %46 = vst [vmem:[#allocation7] sm:$0xf] %v45
    // Predicated region
    $region18: #{tpu_custom_call.1} parent=1 // pred_check
      _
    $region19: #{tpu_custom_call.1} parent=1 // pred_check_branch
      %48 = sbr.rel (0) target = $region21
    $region20: #{tpu_custom_call.1} parent=1 // pred_region
      %50 = vsyncadd [#allocation4], 0
      %s52 = sshll.u32 [#allocation7], 4
      %s53 = int_to_ptr.vmem [resolvable:$true] %s52
      %s54 = sshll.u32 %s2, 4
      %s55 = int_to_ptr.hbm [resolvable:$true] %s54
      %57 = dma.vmem_to_hbm [thread:$0]  %s53, 64, %s55, [#allocation4]
    $region21: #{tpu_custom_call.1} parent=1 // pred_fallthru
      _
    // Predicated region
    $region22: #{tpu_custom_call.1} parent=1 // pred_check
      _
    $region23: #{tpu_custom_call.1} parent=1 // pred_check_branch
      %59 = sbr.rel (0) target = $region25
    $region24: #{tpu_custom_call.1} parent=1 // pred_region
      %61 = dma.done [#allocation4], 64
    $region25: #{tpu_custom_call.1} parent=1 // pred_fallthru
      _
    %62 = vsyncpa [#allocation3], 1
    %63 = vsyncpa [#allocation6], 1
    %64 = vsyncpa [#allocation4], 1

</llo_original>
